<compile_context>
chip_gen: v5e
topology: v5e:2x2
jax: 0.10.0
libtpu: 0.0.40
codegen_flags: <defaults>
</compile_context>

<pallas_src>
import functools
import math

import jax
import jax.numpy as jnp
from jax.experimental import pallas as pl
from jax.experimental.pallas import tpu as pltpu


def _pick_q_tile(S: int) -> int:
    for t in (512, 256, 128):
        if S % t == 0:
            return t
    return S  # small / irregular S: one tile covering the whole sequence


def _transformer_block_kernel(x_ref, wqkv_ref, bqkv_ref, wo_ref, bo_ref,
                              o_ref,
                              q_sc, k_sc, v_sc,
                              *, num_heads: int, eps: float, q_tile: int):
    # x_ref: (S, D) slab for this batch element (batch dim squeezed by BlockSpec)
    S, D = x_ref.shape
    head_dim = D // num_heads
    scale = 1.0 / math.sqrt(head_dim)
    qi = pl.program_id(1)

    # ---- once per batch element: LayerNorm + fused QKV projection ----
    @pl.when(qi == 0)
    def _():
        x = x_ref[...].astype(jnp.float32)                    # (S, D)
        mean = jnp.mean(x, axis=-1, keepdims=True)
        cen = x - mean
        var = jnp.mean(cen * cen, axis=-1, keepdims=True)
        xn = cen * jax.lax.rsqrt(var + eps)                   # affine folded into W/b

        # single fused (S, D) x (D, 3D) bf16 matmul, f32 accumulation
        qkv = jnp.dot(xn.astype(jnp.bfloat16), wqkv_ref[...],
                      preferred_element_type=jnp.float32)
        qkv = qkv + bqkv_ref[...]                             # (S, 3D) f32
        q_sc[...] = qkv[:, :D].astype(jnp.bfloat16)
        k_sc[...] = qkv[:, D:2 * D].astype(jnp.bfloat16)
        v_sc[...] = qkv[:, 2 * D:].astype(jnp.bfloat16)

    # ---- per q-tile attention + output projection + residual ----
    row0 = pl.multiple_of(qi * q_tile, q_tile)
    q_t = q_sc[pl.ds(row0, q_tile), :]                        # (TQ, D) bf16
    k_all = k_sc[...]                                         # (S, D)  bf16
    v_all = v_sc[...]                                         # (S, D)  bf16

    acc = jnp.zeros((q_tile, D), jnp.float32)
    for h in range(num_heads):                                # static unroll
        lo = h * head_dim
        qh = q_t[:, lo:lo + head_dim]                         # (TQ, hd)
        kh = k_all[:, lo:lo + head_dim]                       # (S, hd)
        vh = v_all[:, lo:lo + head_dim]                       # (S, hd)

        # contraction on head_dim; K transpose folded into dot_general
        s = jax.lax.dot_general(qh, kh, (((1,), (1,)), ((), ())),
                                preferred_element_type=jnp.float32) * scale
        s = s - jnp.max(s, axis=-1, keepdims=True)
        p = jnp.exp(s)                                        # (TQ, S) f32
        p = p * pl.reciprocal(jnp.sum(p, axis=-1, keepdims=True), approx=True)

        head_out = jnp.dot(p.astype(jnp.bfloat16), vh,
                           preferred_element_type=jnp.float32)  # (TQ, hd)
        # accumulate directly into the output projection (no concatenate)
        acc = acc + jnp.dot(head_out.astype(jnp.bfloat16),
                            wo_ref[lo:lo + head_dim, :],
                            preferred_element_type=jnp.float32)

    out = acc + bo_ref[...]
    x_tile = x_ref[pl.ds(row0, q_tile), :].astype(jnp.float32)
    o_ref[...] = (x_tile + out).astype(o_ref.dtype)


def transformer_block(x, params, *, num_heads: int, eps: float = 1e-5):
    B, S, D = x.shape
    assert D % num_heads == 0

    q_tile = _pick_q_tile(S)
    nq = S // q_tile

    # ---- host-side packing & LayerNorm-affine fold ----
    gamma = params["gamma"].astype(jnp.float32)               # (1, D)
    beta = params["beta"].astype(jnp.float32)                 # (1, D)
    wqkv_f32 = jnp.concatenate(
        [params["wq"], params["wk"], params["wv"]], axis=1).astype(jnp.float32)
    bqkv_f32 = jnp.concatenate(
        [params["bq"], params["bk"], params["bv"]], axis=1).astype(jnp.float32)
    # (xn*gamma + beta) @ W + b  ==  xn @ (gamma.T * W) + (beta @ W + b)
    wqkv = (gamma.reshape(D, 1) * wqkv_f32).astype(jnp.bfloat16)   # (D, 3D) bf16
    bqkv = (beta @ wqkv_f32 + bqkv_f32).astype(jnp.float32)        # (1, 3D) f32
    wo = params["wo"].astype(jnp.bfloat16)
    bo = params["bo"].astype(jnp.float32)

    kernel = functools.partial(_transformer_block_kernel,
                               num_heads=num_heads, eps=eps, q_tile=q_tile)

    in_specs = [
        pl.BlockSpec((None, S, D), lambda b, qi: (b, 0, 0)),   # x (full slab, resident over qi)
        pl.BlockSpec(wqkv.shape, lambda b, qi: (0, 0)),        # fused+folded QKV weight
        pl.BlockSpec(bqkv.shape, lambda b, qi: (0, 0)),        # fused+folded QKV bias
        pl.BlockSpec(wo.shape, lambda b, qi: (0, 0)),          # output weight
        pl.BlockSpec(bo.shape, lambda b, qi: (0, 0)),          # output bias
    ]
    out_spec = pl.BlockSpec((None, q_tile, D), lambda b, qi: (b, qi, 0))

    return pl.pallas_call(
        kernel,
        out_shape=jax.ShapeDtypeStruct((B, S, D), x.dtype),
        grid=(B, nq),
        in_specs=in_specs,
        out_specs=out_spec,
        scratch_shapes=[
            pltpu.VMEM((S, D), jnp.bfloat16),   # Q slab (normalized, projected)
            pltpu.VMEM((S, D), jnp.bfloat16),   # K slab
            pltpu.VMEM((S, D), jnp.bfloat16),   # V slab
        ],
        compiler_params=pltpu.CompilerParams(
            dimension_semantics=("parallel", "arbitrary"),
            vmem_limit_bytes=48 * 1024 * 1024,
        ),
    )(x, wqkv, bqkv, wo, bo)


def init_params(key, hidden_dims: int):
    ks = jax.random.split(key, 8)
    std = 1.0 / math.sqrt(hidden_dims)
    D = hidden_dims
    return {
        # LayerNorm (PyTorch default init: gamma=1, beta=0), kept 2D for TPU layout.
        "gamma": jnp.ones((1, D), jnp.float32),
        "beta": jnp.zeros((1, D), jnp.float32),
        # Linear weights in (in, out) layout.
        "wq": jax.random.normal(ks[0], (D, D), jnp.float32) * std,
        "bq": jax.random.normal(ks[1], (1, D), jnp.float32) * std,
        "wk": jax.random.normal(ks[2], (D, D), jnp.float32) * std,
        "bk": jax.random.normal(ks[3], (1, D), jnp.float32) * std,
        "wv": jax.random.normal(ks[4], (D, D), jnp.float32) * std,
        "bv": jax.random.normal(ks[5], (1, D), jnp.float32) * std,
        "wo": jax.random.normal(ks[6], (D, D), jnp.float32) * std,
        "bo": jax.random.normal(ks[7], (1, D), jnp.float32) * std,
    }


def transformer_block_ref(x, params, *, num_heads: int, eps: float = 1e-5):
    """Pure-JAX f32 reference for correctness checking."""
    B, S, D = x.shape
    hd = D // num_heads
    mean = jnp.mean(x, axis=-1, keepdims=True)
    var = jnp.mean((x - mean) ** 2, axis=-1, keepdims=True)
    xn = (x - mean) / jnp.sqrt(var + eps) * params["gamma"][0] + params["beta"][0]
    q = xn @ params["wq"] + params["bq"][0]
    k = xn @ params["wk"] + params["bk"][0]
    v = xn @ params["wv"] + params["bv"][0]
    q = q.reshape(B, S, num_heads, hd).transpose(0, 2, 1, 3)
    k = k.reshape(B, S, num_heads, hd).transpose(0, 2, 1, 3)
    v = v.reshape(B, S, num_heads, hd).transpose(0, 2, 1, 3)
    s = jnp.einsum("bhqd,bhkd->bhqk", q, k) / math.sqrt(hd)
    p = jax.nn.softmax(s, axis=-1)
    a = jnp.einsum("bhqk,bhkd->bhqd", p, v).transpose(0, 2, 1, 3).reshape(B, S, D)
    out = a @ params["wo"] + params["bo"][0]
    return x + out


if __name__ == "__main__":
    B, S, D, H = 2, 8, 32, 4
    key = jax.random.PRNGKey(0)
    kx, kp = jax.random.split(key)
    x = jax.random.normal(kx, (B, S, D), jnp.float32)
    params = init_params(kp, D)

    y = transformer_block(x, params, num_heads=H)
    y = jax.block_until_ready(y)

    y_ref = transformer_block_ref(x, params, num_heads=H)
    assert y.shape == (B, S, D)
    # Tolerance loosened vs the f32 reference: kernel uses bf16 MXU operands
    # (f32 accumulation) and an approx softmax reciprocal.
    assert jnp.allclose(y, y_ref, atol=1e-1, rtol=1e-1), "mismatch vs reference"

    print("KERNEL_OK")
</pallas_src>

<mosaic_0001>
module attributes {stable_mosaic.version = 11 : i64} {
  func.func @_transformer_block_kernel(%arg0: i32, %arg1: i32, %arg2: memref<1x8x32xf32, #tpu.memory_space<vmem>>, %arg3: memref<32x96xbf16, #tpu.memory_space<vmem>>, %arg4: memref<1x96xf32, #tpu.memory_space<vmem>>, %arg5: memref<32x32xbf16, #tpu.memory_space<vmem>>, %arg6: memref<1x32xf32, #tpu.memory_space<vmem>>, %arg7: memref<1x8x32xf32, #tpu.memory_space<vmem>>, %arg8: memref<8x32xbf16, #tpu.memory_space<vmem>>, %arg9: memref<8x32xbf16, #tpu.memory_space<vmem>>, %arg10: memref<8x32xbf16, #tpu.memory_space<vmem>>) attributes {dimension_semantics = [#tpu.dimension_semantics<parallel>, #tpu.dimension_semantics<arbitrary>], iteration_bounds = array<i64: 2, 1>, scalar_prefetch = 0 : i64, scratch_operands = 3 : i64, tpu.core_type = #tpu.core_type<tc>, window_params = [{transform_indices = @transform_0, window_bounds = array<i64: 1, 8, 32>}, {pipeline_mode = #tpu.pipeline_mode<synchronous>, transform_indices = @transform_1, window_bounds = array<i64: 32, 96>}, {pipeline_mode = #tpu.pipeline_mode<synchronous>, transform_indices = @transform_2, window_bounds = array<i64: 1, 96>}, {pipeline_mode = #tpu.pipeline_mode<synchronous>, transform_indices = @transform_3, window_bounds = array<i64: 32, 32>}, {pipeline_mode = #tpu.pipeline_mode<synchronous>, transform_indices = @transform_4, window_bounds = array<i64: 1, 32>}, {transform_indices = @transform_5, window_bounds = array<i64: 1, 8, 32>}]} {
    %c0_i32 = arith.constant 0 : i32
    %0 = arith.cmpi eq, %arg1, %c0_i32 : i32
    %1 = arith.extui %0 : i1 to i32
    %c0_i32_0 = arith.constant 0 : i32
    %2 = arith.cmpi ne, %1, %c0_i32_0 : i32
    scf.if %2 {
      %c0_41 = arith.constant 0 : index
      %c0_42 = arith.constant 0 : index
      %c0_43 = arith.constant 0 : index
      %108 = vector.load %arg2[%c0_41, %c0_42, %c0_43] : memref<1x8x32xf32, #tpu.memory_space<vmem>>, vector<1x8x32xf32>
      %109 = vector.shape_cast %108 : vector<1x8x32xf32> to vector<8x32xf32>
      %cst_44 = arith.constant dense<0.000000e+00> : vector<8xf32>
      %110 = vector.multi_reduction <add>, %109, %cst_44 [1] : vector<8x32xf32> to vector<8xf32>
      %111 = vector.shape_cast %110 : vector<8xf32> to vector<8x1xf32>
      %cst_45 = arith.constant 3.200000e+01 : f32
      %112 = vector.broadcast %cst_45 : f32 to vector<8x1xf32>
      %113 = arith.divf %111, %112 : vector<8x1xf32>
      %114 = vector.broadcast %113 : vector<8x1xf32> to vector<8x32xf32>
      %115 = arith.subf %109, %114 : vector<8x32xf32>
      %116 = arith.mulf %115, %115 : vector<8x32xf32>
      %cst_46 = arith.constant dense<0.000000e+00> : vector<8xf32>
      %117 = vector.multi_reduction <add>, %116, %cst_46 [1] : vector<8x32xf32> to vector<8xf32>
      %118 = vector.shape_cast %117 : vector<8xf32> to vector<8x1xf32>
      %cst_47 = arith.constant 3.200000e+01 : f32
      %119 = vector.broadcast %cst_47 : f32 to vector<8x1xf32>
      %120 = arith.divf %118, %119 : vector<8x1xf32>
      %cst_48 = arith.constant 9.99999974E-6 : f32
      %121 = vector.broadcast %cst_48 : f32 to vector<8x1xf32>
      %122 = arith.addf %120, %121 : vector<8x1xf32>
      %123 = math.rsqrt %122 : vector<8x1xf32>
      %124 = vector.broadcast %123 : vector<8x1xf32> to vector<8x32xf32>
      %125 = arith.mulf %115, %124 : vector<8x32xf32>
      %126 = arith.truncf %125 : vector<8x32xf32> to vector<8x32xbf16>
      %c0_49 = arith.constant 0 : index
      %c0_50 = arith.constant 0 : index
      %127 = vector.load %arg3[%c0_49, %c0_50] : memref<32x96xbf16, #tpu.memory_space<vmem>>, vector<32x96xbf16>
      %cst_51 = arith.constant dense<0.000000e+00> : vector<8x96xf32>
      %128 = tpu.matmul %126, %127, %cst_51 {dimension_numbers = #tpu.dot_dimension_numbers<[1], [0], [0], [1], [0, 0, 1, 1], [], []>} : vector<8x32xbf16>, vector<32x96xbf16>, vector<8x96xf32> -> vector<8x96xf32>
      %c0_52 = arith.constant 0 : index
      %c0_53 = arith.constant 0 : index
      %129 = vector.load %arg4[%c0_52, %c0_53] : memref<1x96xf32, #tpu.memory_space<vmem>>, vector<1x96xf32>
      %130 = vector.broadcast %129 : vector<1x96xf32> to vector<8x96xf32>
      %131 = arith.addf %128, %130 : vector<8x96xf32>
      %132 = vector.extract_strided_slice %131 {offsets = [0, 0], sizes = [8, 32], strides = [1, 1]} : vector<8x96xf32> to vector<8x32xf32>
      %133 = arith.truncf %132 : vector<8x32xf32> to vector<8x32xbf16>
      %c0_54 = arith.constant 0 : index
      %c0_55 = arith.constant 0 : index
      %134 = vector.load %arg8[%c0_54, %c0_55] : memref<8x32xbf16, #tpu.memory_space<vmem>>, vector<8x32xbf16>
      tpu.vector_store %arg8[%c0_54, %c0_55], %133 {strides = array<i32>} : memref<8x32xbf16, #tpu.memory_space<vmem>>, vector<8x32xbf16>,
      %135 = vector.extract_strided_slice %131 {offsets = [0, 32], sizes = [8, 32], strides = [1, 1]} : vector<8x96xf32> to vector<8x32xf32>
      %136 = arith.truncf %135 : vector<8x32xf32> to vector<8x32xbf16>
      %c0_56 = arith.constant 0 : index
      %c0_57 = arith.constant 0 : index
      %137 = vector.load %arg9[%c0_56, %c0_57] : memref<8x32xbf16, #tpu.memory_space<vmem>>, vector<8x32xbf16>
      tpu.vector_store %arg9[%c0_56, %c0_57], %136 {strides = array<i32>} : memref<8x32xbf16, #tpu.memory_space<vmem>>, vector<8x32xbf16>,
      %138 = vector.extract_strided_slice %131 {offsets = [0, 64], sizes = [8, 32], strides = [1, 1]} : vector<8x96xf32> to vector<8x32xf32>
      %139 = arith.truncf %138 : vector<8x32xf32> to vector<8x32xbf16>
      %c0_58 = arith.constant 0 : index
      %c0_59 = arith.constant 0 : index
      %140 = vector.load %arg10[%c0_58, %c0_59] : memref<8x32xbf16, #tpu.memory_space<vmem>>, vector<8x32xbf16>
      tpu.vector_store %arg10[%c0_58, %c0_59], %139 {strides = array<i32>} : memref<8x32xbf16, #tpu.memory_space<vmem>>, vector<8x32xbf16>,
    } else {
    }
    %c8_i32 = arith.constant 8 : i32
    %3 = arith.muli %arg1, %c8_i32 : i32
    %4 = tpu.assume_multiple %3, 8 : i32
    %5 = arith.index_cast %4 : i32 to index
    %c0 = arith.constant 0 : index
    %6 = vector.load %arg8[%5, %c0] : memref<8x32xbf16, #tpu.memory_space<vmem>>, vector<8x32xbf16>
    %c0_1 = arith.constant 0 : index
    %c0_2 = arith.constant 0 : index
    %7 = vector.load %arg9[%c0_1, %c0_2] : memref<8x32xbf16, #tpu.memory_space<vmem>>, vector<8x32xbf16>
    %c0_3 = arith.constant 0 : index
    %c0_4 = arith.constant 0 : index
    %8 = vector.load %arg10[%c0_3, %c0_4] : memref<8x32xbf16, #tpu.memory_space<vmem>>, vector<8x32xbf16>
    %cst = arith.constant 0.000000e+00 : f32
    %9 = vector.broadcast %cst : f32 to vector<8x32xf32>
    %10 = vector.extract_strided_slice %6 {offsets = [0, 0], sizes = [8, 8], strides = [1, 1]} : vector<8x32xbf16> to vector<8x8xbf16>
    %11 = vector.extract_strided_slice %7 {offsets = [0, 0], sizes = [8, 8], strides = [1, 1]} : vector<8x32xbf16> to vector<8x8xbf16>
    %12 = vector.extract_strided_slice %8 {offsets = [0, 0], sizes = [8, 8], strides = [1, 1]} : vector<8x32xbf16> to vector<8x8xbf16>
    %cst_5 = arith.constant dense<0.000000e+00> : vector<8x8xf32>
    %13 = tpu.matmul %10, %11, %cst_5 {dimension_numbers = #tpu.dot_dimension_numbers<[1], [1], [0], [0], [0, 0, 1, 0], [], []>} : vector<8x8xbf16>, vector<8x8xbf16>, vector<8x8xf32> -> vector<8x8xf32>
    %cst_6 = arith.constant 0.353553385 : f32
    %14 = vector.broadcast %cst_6 : f32 to vector<8x8xf32>
    %15 = arith.mulf %13, %14 : vector<8x8xf32>
    %cst_7 = arith.constant dense<0xFF800000> : vector<8xf32>
    %16 = vector.multi_reduction <maximumf>, %15, %cst_7 [1] : vector<8x8xf32> to vector<8xf32>
    %17 = vector.shape_cast %16 : vector<8xf32> to vector<8x1xf32>
    %18 = vector.broadcast %17 : vector<8x1xf32> to vector<8x8xf32>
    %19 = arith.subf %15, %18 : vector<8x8xf32>
    %20 = math.exp %19 : vector<8x8xf32>
    %cst_8 = arith.constant dense<0.000000e+00> : vector<8xf32>
    %21 = vector.multi_reduction <add>, %20, %cst_8 [1] : vector<8x8xf32> to vector<8xf32>
    %22 = vector.shape_cast %21 : vector<8xf32> to vector<8x1xf32>
    %23 = tpu.reciprocal %22 {approx = true} : vector<8x1xf32> -> vector<8x1xf32>
    %24 = vector.broadcast %23 : vector<8x1xf32> to vector<8x8xf32>
    %25 = arith.mulf %20, %24 : vector<8x8xf32>
    %26 = arith.truncf %25 : vector<8x8xf32> to vector<8x8xbf16>
    %cst_9 = arith.constant dense<0.000000e+00> : vector<8x8xf32>
    %27 = tpu.matmul %26, %12, %cst_9 {dimension_numbers = #tpu.dot_dimension_numbers<[1], [0], [0], [1], [0, 0, 1, 1], [], []>} : vector<8x8xbf16>, vector<8x8xbf16>, vector<8x8xf32> -> vector<8x8xf32>
    %28 = arith.truncf %27 : vector<8x8xf32> to vector<8x8xbf16>
    %c0_10 = arith.constant 0 : index
    %c0_11 = arith.constant 0 : index
    %29 = vector.load %arg5[%c0_10, %c0_11] : memref<32x32xbf16, #tpu.memory_space<vmem>>, vector<8x32xbf16>
    %cst_12 = arith.constant dense<0.000000e+00> : vector<8x32xf32>
    %30 = tpu.matmul %28, %29, %cst_12 {dimension_numbers = #tpu.dot_dimension_numbers<[1], [0], [0], [1], [0, 0, 1, 1], [], []>} : vector<8x8xbf16>, vector<8x32xbf16>, vector<8x32xf32> -> vector<8x32xf32>
    %31 = arith.addf %9, %30 : vector<8x32xf32>
    %32 = vector.extract_strided_slice %6 {offsets = [0, 8], sizes = [8, 8], strides = [1, 1]} : vector<8x32xbf16> to vector<8x8xbf16>
    %33 = vector.extract_strided_slice %7 {offsets = [0, 8], sizes = [8, 8], strides = [1, 1]} : vector<8x32xbf16> to vector<8x8xbf16>
    %34 = vector.extract_strided_slice %8 {offsets = [0, 8], sizes = [8, 8], strides = [1, 1]} : vector<8x32xbf16> to vector<8x8xbf16>
    %cst_13 = arith.constant dense<0.000000e+00> : vector<8x8xf32>
    %35 = tpu.matmul %32, %33, %cst_13 {dimension_numbers = #tpu.dot_dimension_numbers<[1], [1], [0], [0], [0, 0, 1, 0], [], []>} : vector<8x8xbf16>, vector<8x8xbf16>, vector<8x8xf32> -> vector<8x8xf32>
    %cst_14 = arith.constant 0.353553385 : f32
    %36 = vector.broadcast %cst_14 : f32 to vector<8x8xf32>
    %37 = arith.mulf %35, %36 : vector<8x8xf32>
    %cst_15 = arith.constant dense<0xFF800000> : vector<8xf32>
    %38 = vector.multi_reduction <maximumf>, %37, %cst_15 [1] : vector<8x8xf32> to vector<8xf32>
    %39 = vector.shape_cast %38 : vector<8xf32> to vector<8x1xf32>
    %40 = vector.broadcast %39 : vector<8x1xf32> to vector<8x8xf32>
    %41 = arith.subf %37, %40 : vector<8x8xf32>
    %42 = math.exp %41 : vector<8x8xf32>
    %cst_16 = arith.constant dense<0.000000e+00> : vector<8xf32>
    %43 = vector.multi_reduction <add>, %42, %cst_16 [1] : vector<8x8xf32> to vector<8xf32>
    %44 = vector.shape_cast %43 : vector<8xf32> to vector<8x1xf32>
    %45 = tpu.reciprocal %44 {approx = true} : vector<8x1xf32> -> vector<8x1xf32>
    %46 = vector.broadcast %45 : vector<8x1xf32> to vector<8x8xf32>
    %47 = arith.mulf %42, %46 : vector<8x8xf32>
    %48 = arith.truncf %47 : vector<8x8xf32> to vector<8x8xbf16>
    %cst_17 = arith.constant dense<0.000000e+00> : vector<8x8xf32>
    %49 = tpu.matmul %48, %34, %cst_17 {dimension_numbers = #tpu.dot_dimension_numbers<[1], [0], [0], [1], [0, 0, 1, 1], [], []>} : vector<8x8xbf16>, vector<8x8xbf16>, vector<8x8xf32> -> vector<8x8xf32>
    %50 = arith.truncf %49 : vector<8x8xf32> to vector<8x8xbf16>
    %c8 = arith.constant 8 : index
    %c0_18 = arith.constant 0 : index
    %51 = vector.load %arg5[%c8, %c0_18] : memref<32x32xbf16, #tpu.memory_space<vmem>>, vector<8x32xbf16>
    %cst_19 = arith.constant dense<0.000000e+00> : vector<8x32xf32>
    %52 = tpu.matmul %50, %51, %cst_19 {dimension_numbers = #tpu.dot_dimension_numbers<[1], [0], [0], [1], [0, 0, 1, 1], [], []>} : vector<8x8xbf16>, vector<8x32xbf16>, vector<8x32xf32> -> vector<8x32xf32>
    %53 = arith.addf %31, %52 : vector<8x32xf32>
    %54 = vector.extract_strided_slice %6 {offsets = [0, 16], sizes = [8, 8], strides = [1, 1]} : vector<8x32xbf16> to vector<8x8xbf16>
    %55 = vector.extract_strided_slice %7 {offsets = [0, 16], sizes = [8, 8], strides = [1, 1]} : vector<8x32xbf16> to vector<8x8xbf16>
    %56 = vector.extract_strided_slice %8 {offsets = [0, 16], sizes = [8, 8], strides = [1, 1]} : vector<8x32xbf16> to vector<8x8xbf16>
    %cst_20 = arith.constant dense<0.000000e+00> : vector<8x8xf32>
    %57 = tpu.matmul %54, %55, %cst_20 {dimension_numbers = #tpu.dot_dimension_numbers<[1], [1], [0], [0], [0, 0, 1, 0], [], []>} : vector<8x8xbf16>, vector<8x8xbf16>, vector<8x8xf32> -> vector<8x8xf32>
    %cst_21 = arith.constant 0.353553385 : f32
    %58 = vector.broadcast %cst_21 : f32 to vector<8x8xf32>
    %59 = arith.mulf %57, %58 : vector<8x8xf32>
    %cst_22 = arith.constant dense<0xFF800000> : vector<8xf32>
    %60 = vector.multi_reduction <maximumf>, %59, %cst_22 [1] : vector<8x8xf32> to vector<8xf32>
    %61 = vector.shape_cast %60 : vector<8xf32> to vector<8x1xf32>
    %62 = vector.broadcast %61 : vector<8x1xf32> to vector<8x8xf32>
    %63 = arith.subf %59, %62 : vector<8x8xf32>
    %64 = math.exp %63 : vector<8x8xf32>
    %cst_23 = arith.constant dense<0.000000e+00> : vector<8xf32>
    %65 = vector.multi_reduction <add>, %64, %cst_23 [1] : vector<8x8xf32> to vector<8xf32>
    %66 = vector.shape_cast %65 : vector<8xf32> to vector<8x1xf32>
    %67 = tpu.reciprocal %66 {approx = true} : vector<8x1xf32> -> vector<8x1xf32>
    %68 = vector.broadcast %67 : vector<8x1xf32> to vector<8x8xf32>
    %69 = arith.mulf %64, %68 : vector<8x8xf32>
    %70 = arith.truncf %69 : vector<8x8xf32> to vector<8x8xbf16>
    %cst_24 = arith.constant dense<0.000000e+00> : vector<8x8xf32>
    %71 = tpu.matmul %70, %56, %cst_24 {dimension_numbers = #tpu.dot_dimension_numbers<[1], [0], [0], [1], [0, 0, 1, 1], [], []>} : vector<8x8xbf16>, vector<8x8xbf16>, vector<8x8xf32> -> vector<8x8xf32>
    %72 = arith.truncf %71 : vector<8x8xf32> to vector<8x8xbf16>
    %c16 = arith.constant 16 : index
    %c0_25 = arith.constant 0 : index
    %73 = vector.load %arg5[%c16, %c0_25] : memref<32x32xbf16, #tpu.memory_space<vmem>>, vector<8x32xbf16>
    %cst_26 = arith.constant dense<0.000000e+00> : vector<8x32xf32>
    %74 = tpu.matmul %72, %73, %cst_26 {dimension_numbers = #tpu.dot_dimension_numbers<[1], [0], [0], [1], [0, 0, 1, 1], [], []>} : vector<8x8xbf16>, vector<8x32xbf16>, vector<8x32xf32> -> vector<8x32xf32>
    %75 = arith.addf %53, %74 : vector<8x32xf32>
    %76 = vector.extract_strided_slice %6 {offsets = [0, 24], sizes = [8, 8], strides = [1, 1]} : vector<8x32xbf16> to vector<8x8xbf16>
    %77 = vector.extract_strided_slice %7 {offsets = [0, 24], sizes = [8, 8], strides = [1, 1]} : vector<8x32xbf16> to vector<8x8xbf16>
    %78 = vector.extract_strided_slice %8 {offsets = [0, 24], sizes = [8, 8], strides = [1, 1]} : vector<8x32xbf16> to vector<8x8xbf16>
    %cst_27 = arith.constant dense<0.000000e+00> : vector<8x8xf32>
    %79 = tpu.matmul %76, %77, %cst_27 {dimension_numbers = #tpu.dot_dimension_numbers<[1], [1], [0], [0], [0, 0, 1, 0], [], []>} : vector<8x8xbf16>, vector<8x8xbf16>, vector<8x8xf32> -> vector<8x8xf32>
    %cst_28 = arith.constant 0.353553385 : f32
    %80 = vector.broadcast %cst_28 : f32 to vector<8x8xf32>
    %81 = arith.mulf %79, %80 : vector<8x8xf32>
    %cst_29 = arith.constant dense<0xFF800000> : vector<8xf32>
    %82 = vector.multi_reduction <maximumf>, %81, %cst_29 [1] : vector<8x8xf32> to vector<8xf32>
    %83 = vector.shape_cast %82 : vector<8xf32> to vector<8x1xf32>
    %84 = vector.broadcast %83 : vector<8x1xf32> to vector<8x8xf32>
    %85 = arith.subf %81, %84 : vector<8x8xf32>
    %86 = math.exp %85 : vector<8x8xf32>
    %cst_30 = arith.constant dense<0.000000e+00> : vector<8xf32>
    %87 = vector.multi_reduction <add>, %86, %cst_30 [1] : vector<8x8xf32> to vector<8xf32>
    %88 = vector.shape_cast %87 : vector<8xf32> to vector<8x1xf32>
    %89 = tpu.reciprocal %88 {approx = true} : vector<8x1xf32> -> vector<8x1xf32>
    %90 = vector.broadcast %89 : vector<8x1xf32> to vector<8x8xf32>
    %91 = arith.mulf %86, %90 : vector<8x8xf32>
    %92 = arith.truncf %91 : vector<8x8xf32> to vector<8x8xbf16>
    %cst_31 = arith.constant dense<0.000000e+00> : vector<8x8xf32>
    %93 = tpu.matmul %92, %78, %cst_31 {dimension_numbers = #tpu.dot_dimension_numbers<[1], [0], [0], [1], [0, 0, 1, 1], [], []>} : vector<8x8xbf16>, vector<8x8xbf16>, vector<8x8xf32> -> vector<8x8xf32>
    %94 = arith.truncf %93 : vector<8x8xf32> to vector<8x8xbf16>
    %c24 = arith.constant 24 : index
    %c0_32 = arith.constant 0 : index
    %95 = vector.load %arg5[%c24, %c0_32] : memref<32x32xbf16, #tpu.memory_space<vmem>>, vector<8x32xbf16>
    %cst_33 = arith.constant dense<0.000000e+00> : vector<8x32xf32>
    %96 = tpu.matmul %94, %95, %cst_33 {dimension_numbers = #tpu.dot_dimension_numbers<[1], [0], [0], [1], [0, 0, 1, 1], [], []>} : vector<8x8xbf16>, vector<8x32xbf16>, vector<8x32xf32> -> vector<8x32xf32>
    %97 = arith.addf %75, %96 : vector<8x32xf32>
    %c0_34 = arith.constant 0 : index
    %c0_35 = arith.constant 0 : index
    %98 = vector.load %arg6[%c0_34, %c0_35] : memref<1x32xf32, #tpu.memory_space<vmem>>, vector<1x32xf32>
    %99 = vector.broadcast %98 : vector<1x32xf32> to vector<8x32xf32>
    %100 = arith.addf %97, %99 : vector<8x32xf32>
    %c0_36 = arith.constant 0 : index
    %101 = arith.index_cast %4 : i32 to index
    %c0_37 = arith.constant 0 : index
    %102 = vector.load %arg2[%c0_36, %101, %c0_37] : memref<1x8x32xf32, #tpu.memory_space<vmem>>, vector<1x8x32xf32>
    %103 = vector.shape_cast %102 : vector<1x8x32xf32> to vector<8x32xf32>
    %104 = arith.addf %103, %100 : vector<8x32xf32>
    %c0_38 = arith.constant 0 : index
    %c0_39 = arith.constant 0 : index
    %c0_40 = arith.constant 0 : index
    %105 = vector.load %arg7[%c0_38, %c0_39, %c0_40] : memref<1x8x32xf32, #tpu.memory_space<vmem>>, vector<1x8x32xf32>
    %106 = vector.shape_cast %105 : vector<1x8x32xf32> to vector<8x32xf32>
    %107 = vector.shape_cast %104 : vector<8x32xf32> to vector<1x8x32xf32>
    tpu.vector_store %arg7[%c0_38, %c0_39, %c0_40], %107 {strides = array<i32>} : memref<1x8x32xf32, #tpu.memory_space<vmem>>, vector<1x8x32xf32>,
    return
  }
  func.func @transform_0(%arg0: i32, %arg1: i32) -> (i32, i32, i32) {
    %c0_i32 = arith.constant 0 : i32
    %c0_i32_0 = arith.constant 0 : i32
    %c0_i32_1 = arith.constant 0 : i32
    return %arg0, %c0_i32, %c0_i32_0 : i32, i32, i32
  }
  func.func @transform_1(%arg0: i32, %arg1: i32) -> (i32, i32) {
    %c0_i32 = arith.constant 0 : i32
    %c0_i32_0 = arith.constant 0 : i32
    %c0_i32_1 = arith.constant 0 : i32
    return %c0_i32, %c0_i32_0 : i32, i32
  }
  func.func @transform_2(%arg0: i32, %arg1: i32) -> (i32, i32) {
    %c0_i32 = arith.constant 0 : i32
    %c0_i32_0 = arith.constant 0 : i32
    %c0_i32_1 = arith.constant 0 : i32
    return %c0_i32, %c0_i32_0 : i32, i32
  }
  func.func @transform_3(%arg0: i32, %arg1: i32) -> (i32, i32) {
    %c0_i32 = arith.constant 0 : i32
    %c0_i32_0 = arith.constant 0 : i32
    %c0_i32_1 = arith.constant 0 : i32
    return %c0_i32, %c0_i32_0 : i32, i32
  }
  func.func @transform_4(%arg0: i32, %arg1: i32) -> (i32, i32) {
    %c0_i32 = arith.constant 0 : i32
    %c0_i32_0 = arith.constant 0 : i32
    %c0_i32_1 = arith.constant 0 : i32
    return %c0_i32, %c0_i32_0 : i32, i32
  }
  func.func @transform_5(%arg0: i32, %arg1: i32) -> (i32, i32, i32) {
    %c0_i32 = arith.constant 0 : i32
    %c0_i32_0 = arith.constant 0 : i32
    return %arg0, %arg1, %c0_i32 : i32, i32, i32
  }
}

</mosaic_0001>

<llo_original>
// kernel: tpu_custom_call.1
$region0: #{tpu_custom_call.1}
  #allocation0 [shape = 'u32[]', space=smem, size = 0x4, offset = 0x4, fixed_abs, tag = 'smem constant byte address 0x4 - core index']
  #allocation1 [shape = 'u32[72,128]{1,0:T(1,128)}', space=vmem, size = 0x9000, scoped, tag = 'internal scratch']
  #allocation2 [shape = 'bf16[8,32]{1,0:T(8,128)(2,1)}', space=vmem, size = 0x800, scoped, tag = 'scratch operand']
  #allocation3 [shape = 'bf16[8,32]{1,0:T(8,128)(2,1)}', space=vmem, size = 0x800, scoped, tag = 'scratch operand']
  #allocation4 [shape = 'bf16[8,32]{1,0:T(8,128)(2,1)}', space=vmem, size = 0x800, scoped, tag = 'scratch operand']
  %s0 = inlined_call_operand.hbm [shape: f32[2,8,32], index: 0, kind: input, shape index: {}]
  %s1 = inlined_call_operand.hbm [shape: bf16[32,96], index: 1, kind: input, shape index: {}]
  %s2 = inlined_call_operand.vmem [shape: f32[1,96], index: 2, kind: input, shape index: {}]
  %s3 = inlined_call_operand.hbm [shape: bf16[32,32], index: 3, kind: input, shape index: {}]
  %s4 = inlined_call_operand.vmem [shape: f32[1,32], index: 4, kind: input, shape index: {}]
  %s5 = inlined_call_operand.hbm [shape: f32[2,8,32], index: 5, kind: output, shape index: {}]
  %s6 = sld [smem:[#allocation0]]
  $region69: #{tpu_custom_call.1} parent=0
    _
  %s8 = ssub.s32 1, %s6
  %s9 = scalar_select 0, %s8, %s6
  $region1: #{tpu_custom_call.1} parent=0
    #allocation5 [shape = 'u8[8192]{0}', space=vmem, size = 0x2000, scoped, tag = 'input window, operand 0']
    #allocation6 [shape = 's32[2]{0}', space=sflag, size = 0x8, scoped, tag = 'scoped memory for tpu_custom_call.1']
    #allocation7 [shape = 's32[2]{0}', space=sflag, size = 0x8, scoped, tag = 'scoped memory for tpu_custom_call.1']
    #allocation8 [shape = 'u8[8192]{0}', space=vmem, size = 0x2000, scoped, tag = 'input window, operand 1, single buffered']
    #allocation9 [shape = 's32[1]{0}', space=sflag, size = 0x4, scoped, tag = 'scoped memory for tpu_custom_call.1']
    #allocation10 [shape = 'u8[8192]{0}', space=vmem, size = 0x2000, scoped, tag = 'input window, operand 3, single buffered']
    #allocation11 [shape = 'u8[8192]{0}', space=vmem, size = 0x2000, scoped, tag = 'output window, operand 0']
    %10 = vsyncpa [#allocation6], 0
    %s11 = scalar_lea.sflag [#allocation6], 1
    %12 = vsyncpa %s11, 0
    %13 = vsyncpa [#allocation9], 0
    %14 = vsyncpa [#allocation7], 0
    %s15 = scalar_lea.sflag [#allocation7], 1
    %16 = vsyncpa %s15, 0
    loop: start=0, step=1, limit=4
    $region2: #{tpu_custom_call.1} parent=1 // loop_pre_header
      _
    $region3: #{tpu_custom_call.1} parent=1 // loop_header
      %s18 = sphi 0, %s22
      %p19 = scmp.ge.s32.totalorder %s18, 4
      %s25 = sphi 0, %s37
      %s26 = sphi 0, %s33
      %s27 = sphi 0, %s25
      %s28 = sphi 0, %s26
      %s29 = sphi 0, %s27
      %s30 = sphi 0, %s28
      %s40 = sphi 0, %s42
      %s43 = sphi 0, %s40
      %s44 = sphi 0, %s43
      %s60 = sphi 0, %s44
      %s64 = sphi 0, %s64
      %s66 = sphi 0, %s64
      %s67 = sphi 0, %s66
      %s81 = sphi 0, %s67
      %s85 = sphi 0, %s85
      %s87 = sphi 0, %s85
      %s88 = sphi 0, %s87
      %s102 = sphi 0, %s88
      %s106 = sphi 0, %s106
      %s108 = sphi 0, %s106
      %s109 = sphi 0, %s108
      %s123 = sphi 0, %s109
      %s127 = sphi 0, %s127
      %s129 = sphi 0, %s127
      %s130 = sphi 0, %s129
      %s144 = sphi 0, %s130
      %s152 = sphi 0, %s154
      %s155 = sphi 0, %s152
      %s156 = sphi 0, %s155
      %s172 = sphi 0, %s156
    $region4: #{tpu_custom_call.1} parent=1 // loop_header_branch
      %21 = sbr.rel (%p19) target = $region8
    $region5: #{tpu_custom_call.1} parent=1 // loop_body
      %s23 = ssub.s32 %s18, 1
      %s24 = ssub.s32 %s18, 2
      %s31 = sadd.s32 1, %s26
      %p32 = scmp.ge.s32.totalorder %s31, 1
      %s33 = scalar_select %p32, 0, %s31
      %s34 = sadd.s32 1, %s25
      %s35 = scalar_select %p32, %s34, %s25
      %p36 = scmp.ge.s32.totalorder %s35, 2
      %s37 = scalar_select %p36, 0, %s35
      %s38 = ssub.s32 %s25, %s37
      %p39 = scmp.eq.s32.totalorder %s38, 0
      %s41 = sadd.s32 %s40, 1
      %s42 = scalar_select %p39, %s40, %s41
      %p45 = pneg %p39
      %p46 = scmp.eq.s32.totalorder %s18, 1
      %p47 = por %p45, %p46
      %p48 = scmp.ne.s32.totalorder %s40, %s43
      %p49 = scmp.eq.s32.totalorder %s18, 0
      %p50 = por %p48, %p49
      %p51 = scmp.ne.s32.totalorder %s40, %s43
      %p52 = scmp.eq.s32.totalorder %s23, 1
      %p53 = por %p51, %p52
      %p54 = scmp.ne.s32.totalorder %s43, %s44
      %p55 = scmp.eq.s32.totalorder %s23, 0
      %p56 = por %p54, %p55
      %p57 = scmp.ne.s32.totalorder %s43, %s44
      %p58 = scmp.eq.s32.totalorder %s24, 1
      %p59 = por %p57, %p58
      %p61 = scmp.ne.s32.totalorder %s44, %s60
      %p62 = scmp.eq.s32.totalorder %s24, 0
      %p63 = por %p61, %p62
      %s65 = sadd.s32 %s64, 1
      %p68 = scmp.eq.s32.totalorder %s18, 1
      %p69 = scmp.ne.s32.totalorder %s64, %s66
      %p70 = scmp.eq.s32.totalorder %s18, 0
      %p71 = por %p69, %p70
      %p72 = scmp.ne.s32.totalorder %s64, %s66
      %p73 = scmp.eq.s32.totalorder %s23, 1
      %p74 = por %p72, %p73
      %p75 = scmp.ne.s32.totalorder %s66, %s67
      %p76 = scmp.eq.s32.totalorder %s23, 0
      %p77 = por %p75, %p76
      %p78 = scmp.ne.s32.totalorder %s66, %s67
      %p79 = scmp.eq.s32.totalorder %s24, 1
      %p80 = por %p78, %p79
      %p82 = scmp.ne.s32.totalorder %s67, %s81
      %p83 = scmp.eq.s32.totalorder %s24, 0
      %p84 = por %p82, %p83
      %s86 = sadd.s32 %s85, 1
      %p89 = scmp.eq.s32.totalorder %s18, 1
      %p90 = scmp.ne.s32.totalorder %s85, %s87
      %p91 = scmp.eq.s32.totalorder %s18, 0
      %p92 = por %p90, %p91
      %p93 = scmp.ne.s32.totalorder %s85, %s87
      %p94 = scmp.eq.s32.totalorder %s23, 1
      %p95 = por %p93, %p94
      %p96 = scmp.ne.s32.totalorder %s87, %s88
      %p97 = scmp.eq.s32.totalorder %s23, 0
      %p98 = por %p96, %p97
      %p99 = scmp.ne.s32.totalorder %s87, %s88
      %p100 = scmp.eq.s32.totalorder %s24, 1
      %p101 = por %p99, %p100
      %p103 = scmp.ne.s32.totalorder %s88, %s102
      %p104 = scmp.eq.s32.totalorder %s24, 0
      %p105 = por %p103, %p104
      %s107 = sadd.s32 %s106, 1
      %p110 = scmp.eq.s32.totalorder %s18, 1
      %p111 = scmp.ne.s32.totalorder %s106, %s108
      %p112 = scmp.eq.s32.totalorder %s18, 0
      %p113 = por %p111, %p112
      %p114 = scmp.ne.s32.totalorder %s106, %s108
      %p115 = scmp.eq.s32.totalorder %s23, 1
      %p116 = por %p114, %p115
      %p117 = scmp.ne.s32.totalorder %s108, %s109
      %p118 = scmp.eq.s32.totalorder %s23, 0
      %p119 = por %p117, %p118
      %p120 = scmp.ne.s32.totalorder %s108, %s109
      %p121 = scmp.eq.s32.totalorder %s24, 1
      %p122 = por %p120, %p121
      %p124 = scmp.ne.s32.totalorder %s109, %s123
      %p125 = scmp.eq.s32.totalorder %s24, 0
      %p126 = por %p124, %p125
      %s128 = sadd.s32 %s127, 1
      %p131 = scmp.eq.s32.totalorder %s18, 1
      %p132 = scmp.ne.s32.totalorder %s127, %s129
      %p133 = scmp.eq.s32.totalorder %s18, 0
      %p134 = por %p132, %p133
      %p135 = scmp.ne.s32.totalorder %s127, %s129
      %p136 = scmp.eq.s32.totalorder %s23, 1
      %p137 = por %p135, %p136
      %p138 = scmp.ne.s32.totalorder %s129, %s130
      %p139 = scmp.eq.s32.totalorder %s23, 0
      %p140 = por %p138, %p139
      %p141 = scmp.ne.s32.totalorder %s129, %s130
      %p142 = scmp.eq.s32.totalorder %s24, 1
      %p143 = por %p141, %p142
      %p145 = scmp.ne.s32.totalorder %s130, %s144
      %p146 = scmp.eq.s32.totalorder %s24, 0
      %p147 = por %p145, %p146
      %s148 = ssub.s32 %s25, %s37
      %s149 = ssub.s32 %s26, %s33
      %s150 = sor.u32 %s148, %s149
      %p151 = scmp.eq.s32.totalorder %s150, 0
      %s153 = sadd.s32 %s152, 1
      %s154 = scalar_select %p151, %s152, %s153
      %p157 = pneg %p151
      %p158 = scmp.eq.s32.totalorder %s18, 1
      %p159 = por %p157, %p158
      %p160 = scmp.ne.s32.totalorder %s152, %s155
      %p161 = scmp.eq.s32.totalorder %s18, 0
      %p162 = por %p160, %p161
      %p163 = scmp.ne.s32.totalorder %s152, %s155
      %p164 = scmp.eq.s32.totalorder %s23, 1
      %p165 = por %p163, %p164
      %p166 = scmp.ne.s32.totalorder %s155, %s156
      %p167 = scmp.eq.s32.totalorder %s23, 0
      %p168 = por %p166, %p167
      %p169 = scmp.ne.s32.totalorder %s155, %s156
      %p170 = scmp.eq.s32.totalorder %s24, 1
      %p171 = por %p169, %p170
      %p173 = scmp.ne.s32.totalorder %s156, %s172
      %p174 = scmp.eq.s32.totalorder %s24, 0
      %p175 = por %p173, %p174
      %p176 = scmp.le.s32.totalorder 1, %s18
      %p177 = scmp.lt.s32.totalorder %s18, 3
      %p178 = pnand %p176, %p177
      %p179 = pneg %p178
      // Predicated region
      $region9: #{tpu_custom_call.1} parent=5 // pred_check
        _
      $region10: #{tpu_custom_call.1} parent=5 // pred_check_branch
        %181 = sbr.rel (%p178) target = $region12
      $region11: #{tpu_custom_call.1} parent=5 // pred_region
        %s182 = ssub.s32 %s18, 1
        // Predicated region
        $region13: #{tpu_custom_call.1} parent=11 // pred_check
          %p183 = pneg %p77
        $region14: #{tpu_custom_call.1} parent=11 // pred_check_branch
          %185 = sbr.rel (%p183) target = $region16
        $region15: #{tpu_custom_call.1} parent=11 // pred_region
          %187 = vsyncadd [#allocation9], 0
          %s188 = sshll.u32 %s1, 4
          %s189 = int_to_ptr.hbm [resolvable:$true] %s188
          %s190 = sshll.u32 [#allocation8], 4
          %s191 = int_to_ptr.vmem [resolvable:$true] %s190
          %196 = dma.hbm_to_vmem [thread:$0]  %s189, 256, %s191, [#allocation9], 64, 64, 4
        $region16: #{tpu_custom_call.1} parent=11 // pred_fallthru
          _
        // Predicated region
        $region17: #{tpu_custom_call.1} parent=11 // pred_check
          %p197 = pneg %p98
        $region18: #{tpu_custom_call.1} parent=11 // pred_check_branch
          %199 = sbr.rel (%p197) target = $region20
        $region19: #{tpu_custom_call.1} parent=11 // pred_region
          _
        $region20: #{tpu_custom_call.1} parent=11 // pred_fallthru
          _
        // Predicated region
        $region21: #{tpu_custom_call.1} parent=11 // pred_check
          %p200 = pneg %p119
        $region22: #{tpu_custom_call.1} parent=11 // pred_check_branch
          %202 = sbr.rel (%p200) target = $region24
        $region23: #{tpu_custom_call.1} parent=11 // pred_region
          %204 = vsyncadd [#allocation9], 0
          %s205 = sshll.u32 %s3, 4
          %s206 = int_to_ptr.hbm [resolvable:$true] %s205
          %s207 = sshll.u32 [#allocation10], 4
          %s208 = int_to_ptr.vmem [resolvable:$true] %s207
          %213 = dma.hbm_to_vmem [thread:$0]  %s206, 256, %s208, [#allocation9], 64, 64, 4
        $region24: #{tpu_custom_call.1} parent=11 // pred_fallthru
          _
        // Predicated region
        $region25: #{tpu_custom_call.1} parent=11 // pred_check
          %p214 = pneg %p140
        $region26: #{tpu_custom_call.1} parent=11 // pred_check_branch
          %216 = sbr.rel (%p214) target = $region28
        $region27: #{tpu_custom_call.1} parent=11 // pred_region
          _
        $region28: #{tpu_custom_call.1} parent=11 // pred_fallthru
          _
      $region12: #{tpu_custom_call.1} parent=5 // pred_fallthru
        _
      %p217 = scmp.lt.s32.totalorder %s18, 2
      // Predicated region
      $region29: #{tpu_custom_call.1} parent=5 // pred_check
        %p218 = pneg %p217
      $region30: #{tpu_custom_call.1} parent=5 // pred_check_branch
        %220 = sbr.rel (%p218) target = $region32
      $region31: #{tpu_custom_call.1} parent=5 // pred_region
        // Predicated region
        $region33: #{tpu_custom_call.1} parent=31 // pred_check
          %p221 = pneg %p50
        $region34: #{tpu_custom_call.1} parent=31 // pred_check_branch
          %223 = sbr.rel (%p221) target = $region36
        $region35: #{tpu_custom_call.1} parent=31 // pred_region
          %s224 = sand.u32 %s40, 1
          %s225 = scalar_lea.sflag [#allocation6], %s224
          %s226 = sand.u32 %s40, 1
          %s227 = smul.addr %s226, 8
          %s228 = scalar_lea.vmem [#allocation5], %s227
          %230 = vsyncadd %s225, 0
          %s231 = smul.addr %s25, 8
          %s232 = scalar_lea.hbm %s0, %s231
          %s234 = sshll.u32 %s232, 4
          %s235 = int_to_ptr.hbm [resolvable:$true] %s234
          %s236 = sshll.u32 %s228, 4
          %s237 = int_to_ptr.vmem [resolvable:$true] %s236
          %239 = dma.hbm_to_vmem [thread:$0]  %s235, 128, %s237, %s225
        $region36: #{tpu_custom_call.1} parent=31 // pred_fallthru
          _
      $region32: #{tpu_custom_call.1} parent=5 // pred_fallthru
        _
      %p240 = scmp.le.s32.totalorder 1, %s18
      %p241 = scmp.lt.s32.totalorder %s18, 3
      %p242 = pnand %p240, %p241
      %p243 = pneg %p242
      // Predicated region
      $region37: #{tpu_custom_call.1} parent=5 // pred_check
        _
      $region38: #{tpu_custom_call.1} parent=5 // pred_check_branch
        %245 = sbr.rel (%p242) target = $region40
      $region39: #{tpu_custom_call.1} parent=5 // pred_region
        %s246 = ssub.s32 %s18, 1
        %s247 = sand.u32 %s43, 1
        %s248 = scalar_lea.sflag [#allocation6], %s247
        %s249 = sand.u32 %s43, 1
        %s250 = smul.addr %s249, 8
        %s251 = scalar_lea.vmem [#allocation5], %s250
        // Predicated region
        $region41: #{tpu_custom_call.1} parent=39 // pred_check
          %p252 = pneg %p56
        $region42: #{tpu_custom_call.1} parent=39 // pred_check_branch
          %254 = sbr.rel (%p252) target = $region44
        $region43: #{tpu_custom_call.1} parent=39 // pred_region
          %256 = dma.done %s248, 128
        $region44: #{tpu_custom_call.1} parent=39 // pred_fallthru
          _
        // Predicated region
        $region45: #{tpu_custom_call.1} parent=39 // pred_check
          %p257 = pneg %p77
        $region46: #{tpu_custom_call.1} parent=39 // pred_check_branch
          %259 = sbr.rel (%p257) target = $region48
        $region47: #{tpu_custom_call.1} parent=39 // pred_region
          %261 = dma.done [#allocation9], 256
        $region48: #{tpu_custom_call.1} parent=39 // pred_fallthru
          _
        // Predicated region
        $region49: #{tpu_custom_call.1} parent=39 // pred_check
          %p262 = pneg %p119
        $region50: #{tpu_custom_call.1} parent=39 // pred_check_branch
          %264 = sbr.rel (%p262) target = $region52
        $region51: #{tpu_custom_call.1} parent=39 // pred_region
          %266 = dma.done [#allocation9], 256
        $region52: #{tpu_custom_call.1} parent=39 // pred_fallthru
          _
        %s267 = sand.u32 %s43, 1
        %s268 = scalar_lea.sflag [#allocation6], %s267
        %s269 = sand.u32 %s43, 1
        %s270 = smul.addr %s269, 8
        %s271 = scalar_lea.vmem [#allocation5], %s270
        %p272 = pneg %p56
        %p273 = pneg %p53
        %p274 = pneg %p77
        %p275 = pneg %p74
        %p276 = pneg %p98
        %p277 = pneg %p95
        %p278 = pneg %p119
        %p279 = pneg %p116
        %p280 = pneg %p140
        %p281 = pneg %p137
        %p282 = pneg %p168
        %p283 = pneg %p165
        %s284 = sand.u32 %s155, 1
        %s285 = scalar_lea.sflag [#allocation7], %s284
        %s286 = sand.u32 %s155, 1
        %s287 = smul.addr %s286, 8
        %s288 = scalar_lea.vmem [#allocation11], %s287
        %p290 = scmp.eq.s32.totalorder %s28, 0
        // Predicated region
        $region53: #{tpu_custom_call.1} parent=39 // pred_check
          %p291 = pneg %p290
        $region54: #{tpu_custom_call.1} parent=39 // pred_check_branch
          %293 = sbr.rel (%p291) target = $region56
        $region55: #{tpu_custom_call.1} parent=39 // pred_region
          %v294 = vld [vmem:[%s251] sm:$0xff]
          %vm295 = vcmask 261120
          %v296 = vsel %vm295, %v294, 0.0
          %297 = vadd.xlane.f32.xlu0 %v296
          %v298 = vpop.xlane.xlu0 %297
          %v299 = vrcp.pop 32.0
          %v300 = vmul.f32 32.0, %v299
          %v301 = vsub.f32 1.0, %v300
          %v302 = vmul.f32 %v299, %v301
          %v303 = vadd.f32 %v299, %v302
          %vm304 = vweird.f32 %v299
          %v305 = vsel %vm304, %v299, %v303
          %v306 = vmul.f32 %v298, %v305
          %v307 = vsub.f32 %v294, %v306
          %v308 = vmul.f32 %v307, %v307
          %v309 = vsel %vm295, %v308, 0.0
          %310 = vadd.xlane.f32.xlu0 %v309
          %v311 = vpop.xlane.xlu0 %310
          %v312 = vmul.f32 %v311, %v305
          %v313 = vadd.f32 %v312, 1e-05
          %v314 = vrsqrt.pop %v313
          %v315 = vmul.f32 %v314, %v313
          %v316 = vmul.f32 %v315, %v314
          %v317 = vmul.f32 0.5, %v316
          %v318 = vsub.f32 1.5, %v317
          %v319 = vmul.f32 %v314, %v318
          %vm320 = vweird.f32 %v313
          %vm321 = vweird.f32 %v314
          %vm322 = vmor %vm320, %vm321
          %v323 = vsel %vm322, %v314, %v319
          %v324 = vmul.f32 %v307, %v323
          %v325 = vpack.c.bf16 %v324, %v324
          %v326 = vld [vmem:[#allocation8] sm:$0xf]
          %v327 = vld [vmem:[#allocation8 + $0x4] sm:$0xf]
          %v328 = vld [vmem:[#allocation8 + $0x8] sm:$0xf]
          %v329 = vld [vmem:[#allocation8 + $0xc] sm:$0xf]
          %v330 = vld [vmem:[%s2] sm:$0x1]
          %v332 = vperm.slane %v330, 0
          %v338 = vunpack.c.l.b16 %v326
          %v339 = vunpack.c.l.b16 %v327
          %v340 = vunpack.c.l.b16 %v328
          %v341 = vunpack.c.l.b16 %v329
          %v342 = vpack.c.b16 %v339, %v338
          %v343 = vpack.c.b16 %v341, %v340
          %v347 = vsel %vm295, %v325, 0
          %349 = vmatpush.bf16.msra.mxu0 0
          %350 = vmatpush.bf16.msra.mxu0 0
          %351 = vmatpush.bf16.msra.mxu0 0
          %352 = vmatpush.bf16.msra.mxu0 0
          %353 = vmatpush.bf16.msra.mxu0 0
          %354 = vmatpush.bf16.msra.mxu0 0
          %355 = vmatpush.bf16.msra.mxu0 %v343
          %356 = vmatpush.bf16.msra.mxu0 %v342
          %357 = vmatmul.bf16.gmra.mxu0 %v347
          %v358 = vpop.f32.mrf.mxu0
          %v359 = vadd.f32 %v332, %v358
          %v360 = vpop.f32.mrf.mxu0
          %361 = vdwg.mxu0
          %v362 = vpack.c.bf16 %v359, %v359
          %vm363 = vcmask 257024
          %364 = vst.msk [vmem:[#allocation2] sm:$0xf] %vm363, %v362
          %366 = vrot.lane.b32.xlu0 %v362, 96
          %v367 = vpop.permute.xlu0 %366
          %369 = vst.msk [vmem:[#allocation3] sm:$0xf] %vm363, %v367
          %370 = vrot.lane.b32.xlu0 %v362, 64
          %v371 = vpop.permute.xlu0 %370
          %373 = vst.msk [vmem:[#allocation4] sm:$0xf] %vm363, %v371
        $region56: #{tpu_custom_call.1} parent=39 // pred_fallthru
          _
        %s374 = smul.u32 %s28, 8
        %s375 = sshra.s32 %s374, 3
        %s376 = sand.u32 %s374, 7
        %s377 = smul.addr %s375, 4
        %s378 = scalar_lea.vmem [#allocation2], %s377
        %v379 = vld [vmem:[%s378] sm:$0xf]
        %v380 = vld [vmem:[#allocation3] sm:$0xf]
        %v381 = vld [vmem:[#allocation4] sm:$0xf]
        %vm382 = vcmask 64512
        %v384 = vsel %vm382, %v379, 0
        %v387 = vsel %vm382, %v380, 0
        %389 = vmatpush.bf16.xpose.msra.mxu0 0
        %390 = vmatpush.bf16.xpose.msra.mxu0 0
        %391 = vmatpush.bf16.xpose.msra.mxu0 0
        %392 = vmatpush.bf16.xpose.msra.mxu0 0
        %393 = vmatpush.bf16.xpose.msra.mxu0 0
        %394 = vmatpush.bf16.xpose.msra.mxu0 0
        %395 = vmatpush.bf16.xpose.msra.mxu0 0
        %396 = vmatpush.bf16.xpose.msra.mxu0 %v387
        %397 = vmatmul.bf16.gmra.mxu0 %v384
        %v398 = vpop.f32.mrf.mxu0
        %v399 = vadd.f32 0.0, %v398
        %v400 = vpop.f32.mrf.mxu0
        %401 = vdwg.mxu0
        %v402 = vmul.f32 %v399, 0.35355338
        %v403 = vsel %vm382, %v402, -inf
        %404 = vmax.xlane.f32.xlu0 %v403
        %v405 = vpop.xlane.xlu0 %404
        %v406 = vsub.f32 %v402, %v405
        %v407 = vmul.f32 %v406, 1.442695
        %v408 = vpow.pop %v407
        %v409 = vsel %vm382, %v408, 0.0
        %410 = vadd.xlane.f32.xlu0 %v409
        %v411 = vpop.xlane.xlu0 %410
        %v412 = vrcp.pop %v411
        %v413 = vmul.f32 %v408, %v412
        %v414 = vpack.c.bf16 %v413, %v413
        %v416 = vsel %vm382, %v414, 0
        %vm418 = vcmask 1043456
        %v420 = vsel %vm418, %v381, 0
        %422 = vmatpush.bf16.msra.mxu0 0
        %423 = vmatpush.bf16.msra.mxu0 0
        %424 = vmatpush.bf16.msra.mxu0 0
        %425 = vmatpush.bf16.msra.mxu0 0
        %426 = vmatpush.bf16.msra.mxu0 0
        %427 = vmatpush.bf16.msra.mxu0 0
        %428 = vmatpush.bf16.msra.mxu0 0
        %429 = vmatpush.bf16.msra.mxu0 %v420
        %430 = vmatmul.bf16.gmra.mxu0 %v416
        %v431 = vpop.f32.mrf.mxu0
        %v432 = vadd.f32 0.0, %v431
        %v433 = vpop.f32.mrf.mxu0
        %434 = vdwg.mxu0
        %v435 = vpack.c.bf16 %v432, %v432
        %v436 = vld [vmem:[#allocation10] sm:$0xf]
        %v438 = vunpack.c.l.b16 %v379
        %v439 = vpack.c.b16 %v438, %v438
        %440 = vrot.lane.b32.xlu0 %v439, 120
        %v441 = vpop.permute.xlu0 %440
        %v443 = vunpack.c.l.b16 %v380
        %v444 = vpack.c.b16 %v443, %v443
        %445 = vrot.lane.b32.xlu0 %v444, 120
        %v446 = vpop.permute.xlu0 %445
        %v448 = vsel %vm382, %v441, 0
        %v451 = vsel %vm382, %v446, 0
        %453 = vmatpush.bf16.xpose.msra.mxu0 0
        %454 = vmatpush.bf16.xpose.msra.mxu0 0
        %455 = vmatpush.bf16.xpose.msra.mxu0 0
        %456 = vmatpush.bf16.xpose.msra.mxu0 0
        %457 = vmatpush.bf16.xpose.msra.mxu0 0
        %458 = vmatpush.bf16.xpose.msra.mxu0 0
        %459 = vmatpush.bf16.xpose.msra.mxu0 0
        %460 = vmatpush.bf16.xpose.msra.mxu0 %v451
        %461 = vmatmul.bf16.gmra.mxu0 %v448
        %v462 = vpop.f32.mrf.mxu0
        %v463 = vadd.f32 0.0, %v462
        %v464 = vpop.f32.mrf.mxu0
        %465 = vdwg.mxu0
        %v466 = vmul.f32 %v463, 0.35355338
        %v467 = vsel %vm382, %v466, -inf
        %468 = vmax.xlane.f32.xlu0 %v467
        %v469 = vpop.xlane.xlu0 %468
        %v470 = vsub.f32 %v466, %v469
        %v471 = vmul.f32 %v470, 1.442695
        %v472 = vpow.pop %v471
        %v473 = vsel %vm382, %v472, 0.0
        %474 = vadd.xlane.f32.xlu0 %v473
        %v475 = vpop.xlane.xlu0 %474
        %v476 = vrcp.pop %v475
        %v477 = vmul.f32 %v472, %v476
        %v478 = vpack.c.bf16 %v477, %v477
        %v480 = vunpack.c.l.b16 %v381
        %v481 = vpack.c.b16 %v480, %v480
        %482 = vrot.lane.b32.xlu0 %v481, 120
        %v483 = vpop.permute.xlu0 %482
        %v485 = vsel %vm382, %v478, 0
        %v488 = vsel %vm418, %v483, 0
        %490 = vmatpush.bf16.msra.mxu0 0
        %491 = vmatpush.bf16.msra.mxu0 0
        %492 = vmatpush.bf16.msra.mxu0 0
        %493 = vmatpush.bf16.msra.mxu0 0
        %494 = vmatpush.bf16.msra.mxu0 0
        %495 = vmatpush.bf16.msra.mxu0 0
        %496 = vmatpush.bf16.msra.mxu0 0
        %497 = vmatpush.bf16.msra.mxu0 %v488
        %498 = vmatmul.bf16.gmra.mxu0 %v485
        %v499 = vpop.f32.mrf.mxu0
        %v500 = vadd.f32 0.0, %v499
        %v501 = vpop.f32.mrf.mxu0
        %502 = vdwg.mxu0
        %v503 = vpack.c.bf16 %v500, %v500
        %v504 = vld [vmem:[#allocation10 + $0x4] sm:$0xf]
        %v506 = vsel %vm382, %v503, 0
        %v509 = vsel %vm418, %v504, 0
        %511 = vmatpush.bf16.msra.mxu0 0
        %512 = vmatpush.bf16.msra.mxu0 0
        %513 = vmatpush.bf16.msra.mxu0 0
        %514 = vmatpush.bf16.msra.mxu0 0
        %515 = vmatpush.bf16.msra.mxu0 0
        %516 = vmatpush.bf16.msra.mxu0 0
        %517 = vmatpush.bf16.msra.mxu0 0
        %518 = vmatpush.bf16.msra.mxu0 %v509
        %519 = vmatmul.bf16.gmra.mxu0 %v506
        %v520 = vpop.f32.mrf.mxu0
        %v521 = vadd.f32 0.0, %v520
        %v522 = vpop.f32.mrf.mxu0
        %523 = vdwg.mxu0
        %v525 = vsel %vm382, %v435, 0
        %v528 = vsel %vm418, %v436, 0
        %530 = vmatpush.bf16.msra.mxu0 0
        %531 = vmatpush.bf16.msra.mxu0 0
        %532 = vmatpush.bf16.msra.mxu0 0
        %533 = vmatpush.bf16.msra.mxu0 0
        %534 = vmatpush.bf16.msra.mxu0 0
        %535 = vmatpush.bf16.msra.mxu0 0
        %536 = vmatpush.bf16.msra.mxu0 0
        %537 = vmatpush.bf16.msra.mxu0 %v528
        %538 = vmatmul.bf16.gmra.mxu0 %v525
        %v539 = vpop.f32.mrf.mxu0
        %v540 = vadd.f32 %v521, %v539
        %v541 = vpop.f32.mrf.mxu0
        %542 = vdwg.mxu0
        %543 = vrot.lane.b32.xlu0 %v439, 112
        %v544 = vpop.permute.xlu0 %543
        %545 = vrot.lane.b32.xlu0 %v444, 112
        %v546 = vpop.permute.xlu0 %545
        %v548 = vsel %vm382, %v544, 0
        %v551 = vsel %vm382, %v546, 0
        %553 = vmatpush.bf16.xpose.msra.mxu0 0
        %554 = vmatpush.bf16.xpose.msra.mxu0 0
        %555 = vmatpush.bf16.xpose.msra.mxu0 0
        %556 = vmatpush.bf16.xpose.msra.mxu0 0
        %557 = vmatpush.bf16.xpose.msra.mxu0 0
        %558 = vmatpush.bf16.xpose.msra.mxu0 0
        %559 = vmatpush.bf16.xpose.msra.mxu0 0
        %560 = vmatpush.bf16.xpose.msra.mxu0 %v551
        %561 = vmatmul.bf16.gmra.mxu0 %v548
        %v562 = vpop.f32.mrf.mxu0
        %v563 = vadd.f32 0.0, %v562
        %v564 = vpop.f32.mrf.mxu0
        %565 = vdwg.mxu0
        %v566 = vmul.f32 %v563, 0.35355338
        %v567 = vsel %vm382, %v566, -inf
        %568 = vmax.xlane.f32.xlu0 %v567
        %v569 = vpop.xlane.xlu0 %568
        %v570 = vsub.f32 %v566, %v569
        %v571 = vmul.f32 %v570, 1.442695
        %v572 = vpow.pop %v571
        %v573 = vsel %vm382, %v572, 0.0
        %574 = vadd.xlane.f32.xlu0 %v573
        %v575 = vpop.xlane.xlu0 %574
        %v576 = vrcp.pop %v575
        %v577 = vmul.f32 %v572, %v576
        %v578 = vpack.c.bf16 %v577, %v577
        %579 = vrot.lane.b32.xlu0 %v481, 112
        %v580 = vpop.permute.xlu0 %579
        %v582 = vsel %vm382, %v578, 0
        %v585 = vsel %vm418, %v580, 0
        %587 = vmatpush.bf16.msra.mxu0 0
        %588 = vmatpush.bf16.msra.mxu0 0
        %589 = vmatpush.bf16.msra.mxu0 0
        %590 = vmatpush.bf16.msra.mxu0 0
        %591 = vmatpush.bf16.msra.mxu0 0
        %592 = vmatpush.bf16.msra.mxu0 0
        %593 = vmatpush.bf16.msra.mxu0 0
        %594 = vmatpush.bf16.msra.mxu0 %v585
        %595 = vmatmul.bf16.gmra.mxu0 %v582
        %v596 = vpop.f32.mrf.mxu0
        %v597 = vadd.f32 0.0, %v596
        %v598 = vpop.f32.mrf.mxu0
        %599 = vdwg.mxu0
        %v600 = vpack.c.bf16 %v597, %v597
        %v601 = vld [vmem:[#allocation10 + $0x8] sm:$0xf]
        %v603 = vsel %vm382, %v600, 0
        %v606 = vsel %vm418, %v601, 0
        %608 = vmatpush.bf16.msra.mxu0 0
        %609 = vmatpush.bf16.msra.mxu0 0
        %610 = vmatpush.bf16.msra.mxu0 0
        %611 = vmatpush.bf16.msra.mxu0 0
        %612 = vmatpush.bf16.msra.mxu0 0
        %613 = vmatpush.bf16.msra.mxu0 0
        %614 = vmatpush.bf16.msra.mxu0 0
        %615 = vmatpush.bf16.msra.mxu0 %v606
        %616 = vmatmul.bf16.gmra.mxu0 %v603
        %v617 = vpop.f32.mrf.mxu0
        %v618 = vadd.f32 0.0, %v617
        %v619 = vpop.f32.mrf.mxu0
        %620 = vdwg.mxu0
        %v621 = vadd.f32 %v540, %v618
        %622 = vrot.lane.b32.xlu0 %v439, 104
        %v623 = vpop.permute.xlu0 %622
        %624 = vrot.lane.b32.xlu0 %v444, 104
        %v625 = vpop.permute.xlu0 %624
        %v627 = vsel %vm382, %v623, 0
        %v630 = vsel %vm382, %v625, 0
        %632 = vmatpush.bf16.xpose.msra.mxu0 0
        %633 = vmatpush.bf16.xpose.msra.mxu0 0
        %634 = vmatpush.bf16.xpose.msra.mxu0 0
        %635 = vmatpush.bf16.xpose.msra.mxu0 0
        %636 = vmatpush.bf16.xpose.msra.mxu0 0
        %637 = vmatpush.bf16.xpose.msra.mxu0 0
        %638 = vmatpush.bf16.xpose.msra.mxu0 0
        %639 = vmatpush.bf16.xpose.msra.mxu0 %v630
        %640 = vmatmul.bf16.gmra.mxu0 %v627
        %v641 = vpop.f32.mrf.mxu0
        %v642 = vadd.f32 0.0, %v641
        %v643 = vpop.f32.mrf.mxu0
        %644 = vdwg.mxu0
        %v645 = vmul.f32 %v642, 0.35355338
        %v646 = vsel %vm382, %v645, -inf
        %647 = vmax.xlane.f32.xlu0 %v646
        %v648 = vpop.xlane.xlu0 %647
        %v649 = vsub.f32 %v645, %v648
        %v650 = vmul.f32 %v649, 1.442695
        %v651 = vpow.pop %v650
        %v652 = vsel %vm382, %v651, 0.0
        %653 = vadd.xlane.f32.xlu0 %v652
        %v654 = vpop.xlane.xlu0 %653
        %v655 = vrcp.pop %v654
        %v656 = vmul.f32 %v651, %v655
        %v657 = vpack.c.bf16 %v656, %v656
        %658 = vrot.lane.b32.xlu0 %v481, 104
        %v659 = vpop.permute.xlu0 %658
        %v661 = vsel %vm382, %v657, 0
        %v664 = vsel %vm418, %v659, 0
        %666 = vmatpush.bf16.msra.mxu0 0
        %667 = vmatpush.bf16.msra.mxu0 0
        %668 = vmatpush.bf16.msra.mxu0 0
        %669 = vmatpush.bf16.msra.mxu0 0
        %670 = vmatpush.bf16.msra.mxu0 0
        %671 = vmatpush.bf16.msra.mxu0 0
        %672 = vmatpush.bf16.msra.mxu0 0
        %673 = vmatpush.bf16.msra.mxu0 %v664
        %674 = vmatmul.bf16.gmra.mxu0 %v661
        %v675 = vpop.f32.mrf.mxu0
        %v676 = vadd.f32 0.0, %v675
        %v677 = vpop.f32.mrf.mxu0
        %678 = vdwg.mxu0
        %v679 = vpack.c.bf16 %v676, %v676
        %v680 = vld [vmem:[#allocation10 + $0xc] sm:$0xf]
        %v682 = vsel %vm382, %v679, 0
        %v685 = vsel %vm418, %v680, 0
        %687 = vmatpush.bf16.msra.mxu0 0
        %688 = vmatpush.bf16.msra.mxu0 0
        %689 = vmatpush.bf16.msra.mxu0 0
        %690 = vmatpush.bf16.msra.mxu0 0
        %691 = vmatpush.bf16.msra.mxu0 0
        %692 = vmatpush.bf16.msra.mxu0 0
        %693 = vmatpush.bf16.msra.mxu0 0
        %694 = vmatpush.bf16.msra.mxu0 %v685
        %695 = vmatmul.bf16.gmra.mxu0 %v682
        %v696 = vpop.f32.mrf.mxu0
        %v697 = vadd.f32 0.0, %v696
        %v698 = vpop.f32.mrf.mxu0
        %699 = vdwg.mxu0
        %v700 = vadd.f32 %v621, %v697
        %v701 = vld [vmem:[%s4] sm:$0x1]
        %v703 = vperm.slane %v701, 0
        %v705 = vadd.f32 %v700, %v703
        %s706 = scalar_lea.vmem %s251, %s374 [#allocation5]
        %v707 = vld [vmem:[%s706] sm:$0xff]
        %v708 = vadd.f32 %v707, %v705
        %vm709 = vcmask 261120
        %710 = vst.msk [vmem:[%s288] sm:$0xff] %vm709, %v708
        %s711 = sand.u32 %s155, 1
        %s712 = scalar_lea.sflag [#allocation7], %s711
        %s713 = sand.u32 %s155, 1
        %s714 = smul.addr %s713, 8
        %s715 = scalar_lea.vmem [#allocation11], %s714
        // Predicated region
        $region57: #{tpu_custom_call.1} parent=39 // pred_check
          %p716 = pneg %p165
        $region58: #{tpu_custom_call.1} parent=39 // pred_check_branch
          %718 = sbr.rel (%p716) target = $region60
        $region59: #{tpu_custom_call.1} parent=39 // pred_region
          %720 = vsyncadd %s712, 0
          %s721 = sadd.s32 %s28, %s27
          %s722 = smul.addr %s721, 8
          %s723 = scalar_lea.hbm %s5, %s722
          %s725 = sshll.u32 %s715, 4
          %s726 = int_to_ptr.vmem [resolvable:$true] %s725
          %s727 = sshll.u32 %s723, 4
          %s728 = int_to_ptr.hbm [resolvable:$true] %s727
          %730 = dma.vmem_to_hbm [thread:$0]  %s726, 128, %s728, %s712
        $region60: #{tpu_custom_call.1} parent=39 // pred_fallthru
          _
      $region40: #{tpu_custom_call.1} parent=5 // pred_fallthru
        _
      %p731 = scmp.le.s32.totalorder 2, %s18
      // Predicated region
      $region61: #{tpu_custom_call.1} parent=5 // pred_check
        %p732 = pneg %p731
      $region62: #{tpu_custom_call.1} parent=5 // pred_check_branch
        %734 = sbr.rel (%p732) target = $region64
      $region63: #{tpu_custom_call.1} parent=5 // pred_region
        %s735 = ssub.s32 %s18, 2
        // Predicated region
        $region65: #{tpu_custom_call.1} parent=63 // pred_check
          %p736 = pneg %p171
        $region66: #{tpu_custom_call.1} parent=63 // pred_check_branch
          %738 = sbr.rel (%p736) target = $region68
        $region67: #{tpu_custom_call.1} parent=63 // pred_region
          %s739 = sand.u32 %s156, 1
          %s740 = scalar_lea.sflag [#allocation7], %s739
          %s741 = sand.u32 %s156, 1
          %s742 = smul.addr %s741, 8
          %s743 = scalar_lea.vmem [#allocation11], %s742
          %745 = dma.done %s740, 128
        $region68: #{tpu_custom_call.1} parent=63 // pred_fallthru
          _
      $region64: #{tpu_custom_call.1} parent=5 // pred_fallthru
        _
    $region6: #{tpu_custom_call.1} parent=1 // loop_footer
      %s22 = sadd.s32 1, %s18
    $region7: #{tpu_custom_call.1} parent=1 // loop_footer_branch
      %17 = sbr.rel target = $region3
    $region8: #{tpu_custom_call.1} parent=1 // loop_exit
      _
    %746 = vsyncpa [#allocation6], 1
    %s747 = scalar_lea.sflag [#allocation6], 1
    %748 = vsyncpa %s747, 1
    %749 = vsyncpa [#allocation9], 1
    %750 = vsyncpa [#allocation7], 1
    %s751 = scalar_lea.sflag [#allocation7], 1
    %752 = vsyncpa %s751, 1

</llo_original>
